<compile_context>
chip_gen: v7x
topology: tpu7x:2x2x1
jax: 0.10.0
libtpu: 0.0.40
codegen_flags: <defaults>
</compile_context>

<pallas_src>
import functools

import numpy as np

import jax
import jax.numpy as jnp
from jax import lax
from jax.experimental import pallas as pl
from jax.experimental.pallas import tpu as pltpu


_NEG_BIG = -1e30                       # folded (k, j) pair mask; assumes |scores| << 1e30
_TARGET_BLOCK_BYTES = 2 * 1024 * 1024  # per input block (Pallas double-buffers it)
_SUBLANE = 8


def _round_up(x, m):
    return (x + m - 1) // m * m


def _cdiv(a, b):
    return (a + b - 1) // b


def _sranking_kernel(margins_ref, x_ref, out_ref, *, batch_size, b_rows, need_mask):
    """One (b_rows, M) tile of scores; batch along sublanes, M along lanes.

    margins_ref: (K, M) f32 with margins[k-1, j] = 1/j for j >= k and a large
    negative value otherwise, so a single relu discards invalid (k, j) pairs.
    """
    x = x_ref[...].astype(jnp.float32)            # (b_rows, M), compute in f32
    margins = margins_ref[...]                    # (K, M) resident constant
    k_max = margins.shape[0]

    acc = jnp.zeros((b_rows, 1), jnp.float32)
    for k in range(1, k_max + 1):                 # K <= top_k, fully unrolled
        margin_row = margins[k - 1:k, :]          # (1, M) static row slice
        anchor = x[:, k - 1:k]                    # (b_rows, 1) static lane slice
        terms = jnp.maximum((x - anchor) + margin_row, 0.0)
        acc = acc + jnp.sum(terms, axis=1, keepdims=True)

    if need_mask:                                 # drop rows that are batch padding
        row = (pl.program_id(0) * b_rows
               + lax.broadcasted_iota(jnp.int32, (b_rows, 1), 0))
        acc = jnp.where(row < batch_size, acc, 0.0)   # true select: NaN/Inf safe

    out_ref[...] = jnp.broadcast_to(jnp.sum(acc), (1, 1, 1))


def sranking_loss(batch, top_k=5):
    """batch: (B, M, 1) scores (PyTorch layout).  Returns a (1,) float32 loss."""
    batch = jnp.asarray(batch)
    if batch.dtype != jnp.bfloat16:               # bf16 stays bf16 in HBM (half traffic);
        batch = batch.astype(jnp.float32)         # everything computes in f32
    B, M = int(batch.shape[0]), int(batch.shape[1])
    K = min(int(top_k), M - 1)
    if K <= 0 or B == 0:
        return jnp.zeros((1,), jnp.float32)

    x = batch.reshape(B, M)                       # squeeze trailing 1: free, no copy

    # Trace-time constants: 1/j margins with the (k, j) pair mask folded in.
    inv_j = np.zeros((M,), np.float32)
    inv_j[1:] = 1.0 / np.arange(1, M, dtype=np.float32)
    margins_np = np.full((K, M), _NEG_BIG, np.float32)
    for k in range(1, K + 1):
        margins_np[k - 1, k:] = inv_j[k:]
    margins = jnp.asarray(margins_np)

    # Tile the batch axis (sublane dim).  Rows are M contiguous elements, so
    # the input DMA stays dense for any M; target ~2 MiB of input per block
    # (comfortable inside every generation's scoped-VMEM default).
    itemsize = x.dtype.itemsize
    rows = max(_SUBLANE,
               (_TARGET_BLOCK_BYTES // max(M * itemsize, 1)) // _SUBLANE * _SUBLANE)
    if B > _SUBLANE:
        # Ensure >= 2 grid blocks when possible so v7x's two TCs both get work.
        rows = min(rows, _round_up(_cdiv(B, 2), _SUBLANE))
    b_rows = B if rows >= B else rows
    num_blocks = _cdiv(B, b_rows)
    need_mask = (num_blocks * b_rows) != B

    kernel = functools.partial(
        _sranking_kernel, batch_size=B, b_rows=b_rows, need_mask=need_mask)
    cost = pl.CostEstimate(
        flops=4 * K * M * B,
        transcendentals=0,
        bytes_accessed=B * M * itemsize + K * M * 4 + num_blocks * 4)

    partials = pl.pallas_call(
        kernel,
        out_shape=jax.ShapeDtypeStruct((num_blocks, 1, 1), jnp.float32),
        grid=(num_blocks,),
        in_specs=[pl.BlockSpec((K, M), lambda i: (0, 0)),        # resident margins
                  pl.BlockSpec((b_rows, M), lambda i: (i, 0))],  # scores tile
        out_specs=pl.BlockSpec((1, 1, 1), lambda i: (i, 0, 0)),
        compiler_params=pltpu.CompilerParams(
            dimension_semantics=("parallel",),
            vmem_limit_bytes=32 * 1024 * 1024),
        cost_estimate=cost,
    )(margins, x)
    return jnp.sum(partials).reshape(1)


def _reference_loss(batch, top_k=5):
    """Pure-Python reference mirroring the PyTorch loops."""
    b = np.asarray(batch, dtype=np.float32)
    B, M, _ = b.shape
    K = min(int(top_k), M - 1)
    total = 0.0
    for i in range(B):
        for k in range(1, K + 1):
            for j in range(k, M):
                total += max(0.0, 1.0 / j + float(b[i, j, 0]) - float(b[i, k - 1, 0]))
    return total


if __name__ == "__main__":
    key = jax.random.PRNGKey(0)

    # Small case (single block, block == full array).
    B, M, top_k = 2, 8, 5
    batch = jax.random.normal(key, (B, M, 1), dtype=jnp.float32)
    out = jax.block_until_ready(sranking_loss(batch, top_k=top_k))
    ref = _reference_loss(np.asarray(batch), top_k=top_k)
    assert out.shape == (1,)
    assert abs(float(out[0]) - ref) < 1e-4, (float(out[0]), ref)

    # Multi-block case exercising the partial last block + row mask.
    key2 = jax.random.PRNGKey(1)
    B2, M2 = 37, 16
    batch2 = jax.random.normal(key2, (B2, M2, 1), dtype=jnp.float32)
    out2 = jax.block_until_ready(sranking_loss(batch2, top_k=top_k))
    ref2 = _reference_loss(np.asarray(batch2), top_k=top_k)
    assert out2.shape == (1,)
    assert abs(float(out2[0]) - ref2) < 1e-3 * max(1.0, abs(ref2)), (float(out2[0]), ref2)

    print("KERNEL_OK")
</pallas_src>

<mosaic_0001>
module attributes {stable_mosaic.version = 11 : i64} {
  func.func @_sranking_kernel(%arg0: i32, %arg1: memref<5x8xf32, #tpu.memory_space<vmem>>, %arg2: memref<2x8xf32, #tpu.memory_space<vmem>>, %arg3: memref<1x1x1xf32, #tpu.memory_space<vmem>>) attributes {dimension_semantics = [#tpu.dimension_semantics<parallel>], iteration_bounds = array<i64: 1>, scalar_prefetch = 0 : i64, scratch_operands = 0 : i64, tpu.core_type = #tpu.core_type<tc>, window_params = [{pipeline_mode = #tpu.pipeline_mode<synchronous>, transform_indices = @transform_0, window_bounds = array<i64: 5, 8>}, {transform_indices = @transform_1, window_bounds = array<i64: 2, 8>}, {transform_indices = @transform_2, window_bounds = array<i64: 1, 1, 1>}]} {
    %c0 = arith.constant 0 : index
    %c0_0 = arith.constant 0 : index
    %0 = vector.load %arg2[%c0, %c0_0] : memref<2x8xf32, #tpu.memory_space<vmem>>, vector<2x8xf32>
    %c0_1 = arith.constant 0 : index
    %c0_2 = arith.constant 0 : index
    %1 = vector.load %arg1[%c0_1, %c0_2] : memref<5x8xf32, #tpu.memory_space<vmem>>, vector<5x8xf32>
    %cst = arith.constant 0.000000e+00 : f32
    %2 = vector.broadcast %cst : f32 to vector<2x1xf32>
    %3 = vector.extract_strided_slice %1 {offsets = [0, 0], sizes = [1, 8], strides = [1, 1]} : vector<5x8xf32> to vector<1x8xf32>
    %4 = vector.extract_strided_slice %0 {offsets = [0, 0], sizes = [2, 1], strides = [1, 1]} : vector<2x8xf32> to vector<2x1xf32>
    %5 = vector.broadcast %4 : vector<2x1xf32> to vector<2x8xf32>
    %6 = arith.subf %0, %5 : vector<2x8xf32>
    %7 = vector.broadcast %3 : vector<1x8xf32> to vector<2x8xf32>
    %8 = arith.addf %6, %7 : vector<2x8xf32>
    %cst_3 = arith.constant 0.000000e+00 : f32
    %9 = vector.broadcast %cst_3 : f32 to vector<2x8xf32>
    %10 = arith.maximumf %8, %9 : vector<2x8xf32>
    %cst_4 = arith.constant dense<0.000000e+00> : vector<2xf32>
    %11 = vector.multi_reduction <add>, %10, %cst_4 [1] : vector<2x8xf32> to vector<2xf32>
    %12 = vector.shape_cast %11 : vector<2xf32> to vector<2x1xf32>
    %13 = arith.addf %2, %12 : vector<2x1xf32>
    %14 = vector.extract_strided_slice %1 {offsets = [1, 0], sizes = [1, 8], strides = [1, 1]} : vector<5x8xf32> to vector<1x8xf32>
    %15 = vector.extract_strided_slice %0 {offsets = [0, 1], sizes = [2, 1], strides = [1, 1]} : vector<2x8xf32> to vector<2x1xf32>
    %16 = vector.broadcast %15 : vector<2x1xf32> to vector<2x8xf32>
    %17 = arith.subf %0, %16 : vector<2x8xf32>
    %18 = vector.broadcast %14 : vector<1x8xf32> to vector<2x8xf32>
    %19 = arith.addf %17, %18 : vector<2x8xf32>
    %cst_5 = arith.constant 0.000000e+00 : f32
    %20 = vector.broadcast %cst_5 : f32 to vector<2x8xf32>
    %21 = arith.maximumf %19, %20 : vector<2x8xf32>
    %cst_6 = arith.constant dense<0.000000e+00> : vector<2xf32>
    %22 = vector.multi_reduction <add>, %21, %cst_6 [1] : vector<2x8xf32> to vector<2xf32>
    %23 = vector.shape_cast %22 : vector<2xf32> to vector<2x1xf32>
    %24 = arith.addf %13, %23 : vector<2x1xf32>
    %25 = vector.extract_strided_slice %1 {offsets = [2, 0], sizes = [1, 8], strides = [1, 1]} : vector<5x8xf32> to vector<1x8xf32>
    %26 = vector.extract_strided_slice %0 {offsets = [0, 2], sizes = [2, 1], strides = [1, 1]} : vector<2x8xf32> to vector<2x1xf32>
    %27 = vector.broadcast %26 : vector<2x1xf32> to vector<2x8xf32>
    %28 = arith.subf %0, %27 : vector<2x8xf32>
    %29 = vector.broadcast %25 : vector<1x8xf32> to vector<2x8xf32>
    %30 = arith.addf %28, %29 : vector<2x8xf32>
    %cst_7 = arith.constant 0.000000e+00 : f32
    %31 = vector.broadcast %cst_7 : f32 to vector<2x8xf32>
    %32 = arith.maximumf %30, %31 : vector<2x8xf32>
    %cst_8 = arith.constant dense<0.000000e+00> : vector<2xf32>
    %33 = vector.multi_reduction <add>, %32, %cst_8 [1] : vector<2x8xf32> to vector<2xf32>
    %34 = vector.shape_cast %33 : vector<2xf32> to vector<2x1xf32>
    %35 = arith.addf %24, %34 : vector<2x1xf32>
    %36 = vector.extract_strided_slice %1 {offsets = [3, 0], sizes = [1, 8], strides = [1, 1]} : vector<5x8xf32> to vector<1x8xf32>
    %37 = vector.extract_strided_slice %0 {offsets = [0, 3], sizes = [2, 1], strides = [1, 1]} : vector<2x8xf32> to vector<2x1xf32>
    %38 = vector.broadcast %37 : vector<2x1xf32> to vector<2x8xf32>
    %39 = arith.subf %0, %38 : vector<2x8xf32>
    %40 = vector.broadcast %36 : vector<1x8xf32> to vector<2x8xf32>
    %41 = arith.addf %39, %40 : vector<2x8xf32>
    %cst_9 = arith.constant 0.000000e+00 : f32
    %42 = vector.broadcast %cst_9 : f32 to vector<2x8xf32>
    %43 = arith.maximumf %41, %42 : vector<2x8xf32>
    %cst_10 = arith.constant dense<0.000000e+00> : vector<2xf32>
    %44 = vector.multi_reduction <add>, %43, %cst_10 [1] : vector<2x8xf32> to vector<2xf32>
    %45 = vector.shape_cast %44 : vector<2xf32> to vector<2x1xf32>
    %46 = arith.addf %35, %45 : vector<2x1xf32>
    %47 = vector.extract_strided_slice %1 {offsets = [4, 0], sizes = [1, 8], strides = [1, 1]} : vector<5x8xf32> to vector<1x8xf32>
    %48 = vector.extract_strided_slice %0 {offsets = [0, 4], sizes = [2, 1], strides = [1, 1]} : vector<2x8xf32> to vector<2x1xf32>
    %49 = vector.broadcast %48 : vector<2x1xf32> to vector<2x8xf32>
    %50 = arith.subf %0, %49 : vector<2x8xf32>
    %51 = vector.broadcast %47 : vector<1x8xf32> to vector<2x8xf32>
    %52 = arith.addf %50, %51 : vector<2x8xf32>
    %cst_11 = arith.constant 0.000000e+00 : f32
    %53 = vector.broadcast %cst_11 : f32 to vector<2x8xf32>
    %54 = arith.maximumf %52, %53 : vector<2x8xf32>
    %cst_12 = arith.constant dense<0.000000e+00> : vector<2xf32>
    %55 = vector.multi_reduction <add>, %54, %cst_12 [1] : vector<2x8xf32> to vector<2xf32>
    %56 = vector.shape_cast %55 : vector<2xf32> to vector<2x1xf32>
    %57 = arith.addf %46, %56 : vector<2x1xf32>
    %58 = vector.shape_cast %57 : vector<2x1xf32> to vector<1x2x1xf32>
    %cst_13 = arith.constant dense<0.000000e+00> : vector<1xf32>
    %59 = vector.multi_reduction <add>, %58, %cst_13 [1, 2] : vector<1x2x1xf32> to vector<1xf32>
    %60 = vector.shape_cast %59 : vector<1xf32> to vector<1x1x1xf32>
    %61 = vector.extract %60[0, 0, 0] : f32 from vector<1x1x1xf32>
    %62 = vector.broadcast %61 : f32 to vector<1x1x1xf32>
    %c0_14 = arith.constant 0 : index
    %c0_15 = arith.constant 0 : index
    %c0_16 = arith.constant 0 : index
    %63 = vector.load %arg3[%c0_14, %c0_15, %c0_16] : memref<1x1x1xf32, #tpu.memory_space<vmem>>, vector<1x1x1xf32>
    tpu.vector_store %arg3[%c0_14, %c0_15, %c0_16], %62 {strides = array<i32>} : memref<1x1x1xf32, #tpu.memory_space<vmem>>, vector<1x1x1xf32>,
    return
  }
  func.func @transform_0(%arg0: i32) -> (i32, i32) {
    %c0_i32 = arith.constant 0 : i32
    %c0_i32_0 = arith.constant 0 : i32
    %c0_i32_1 = arith.constant 0 : i32
    return %c0_i32, %c0_i32_0 : i32, i32
  }
  func.func @transform_1(%arg0: i32) -> (i32, i32) {
    %c0_i32 = arith.constant 0 : i32
    %c0_i32_0 = arith.constant 0 : i32
    return %arg0, %c0_i32 : i32, i32
  }
  func.func @transform_2(%arg0: i32) -> (i32, i32, i32) {
    %c0_i32 = arith.constant 0 : i32
    %c0_i32_0 = arith.constant 0 : i32
    %c0_i32_1 = arith.constant 0 : i32
    return %arg0, %c0_i32, %c0_i32_0 : i32, i32, i32
  }
}

</mosaic_0001>

<llo_original>
// kernel: tpu_custom_call.1
$region0: #{tpu_custom_call.1}
  #allocation0 [shape = 'u32[]', space=smem, size = 0x4, offset = 0x4, fixed_abs, tag = 'smem constant byte address 0x4 - core index']
  #allocation1 [shape = 'u32[144,128]{1,0:T(1,128)}', space=vmem, size = 0x12000, scoped, tag = 'internal scratch']
  %s0 = inlined_call_operand.hbm [shape: f32[5,8], index: 0, kind: input, shape index: {}]
  %s1 = inlined_call_operand.vmem [shape: f32[2,8], index: 1, kind: input, shape index: {}]
  %s2 = inlined_call_operand.hbm [shape: f32[1,1,1], index: 2, kind: output, shape index: {}]
  %s3 = sld [smem:[#allocation0]]
  $region22: #{tpu_custom_call.1} parent=0
    _
  %s5 = ssub.s32 1, %s3
  %s6 = scalar_select 0, %s5, %s3
  $region1: #{tpu_custom_call.1} parent=0
    #allocation2 [shape = 'u8[4096]{0}', space=vmem, size = 0x1000, scoped, tag = 'input window, operand 0, single buffered']
    #allocation3 [shape = 's32[1]{0}', space=sflag, size = 0x4, scoped, tag = 'scoped memory for tpu_custom_call.1']
    #allocation4 [shape = 's32[1]{0}', space=sflag, size = 0x4, scoped, tag = 'scoped memory for tpu_custom_call.1']
    #allocation5 [shape = 'u8[512]{0}', space=vmem, size = 0x400, scoped, tag = 'output window, operand 0, single buffered']
    %7 = vsyncpa [#allocation3], 0
    %8 = vsyncpa [#allocation4], 0
    // Predicated region
    $region2: #{tpu_custom_call.1} parent=1 // pred_check
      _
    $region3: #{tpu_custom_call.1} parent=1 // pred_check_branch
      %10 = sbr.rel (0) target = $region5
    $region4: #{tpu_custom_call.1} parent=1 // pred_region
      %s12 = ssub.s32 128, 128
      %13 = vsyncadd [#allocation3], %s12
      %s15 = sshll.u32 [#allocation2], 4
      %s16 = int_to_ptr.vmem [resolvable:$true] %s15
      %18 = dma.hbm_to_vmem [thread:$0]  %s0, 128, %s16, [#allocation3]
    $region5: #{tpu_custom_call.1} parent=1 // pred_fallthru
      _
    // Predicated region
    $region6: #{tpu_custom_call.1} parent=1 // pred_check
      _
    $region7: #{tpu_custom_call.1} parent=1 // pred_check_branch
      %20 = sbr.rel (0) target = $region9
    $region8: #{tpu_custom_call.1} parent=1 // pred_region
      _
    $region9: #{tpu_custom_call.1} parent=1 // pred_fallthru
      _
    // Predicated region
    $region10: #{tpu_custom_call.1} parent=1 // pred_check
      _
    $region11: #{tpu_custom_call.1} parent=1 // pred_check_branch
      %22 = sbr.rel (0) target = $region13
    $region12: #{tpu_custom_call.1} parent=1 // pred_region
      %23 = dma.done [#allocation3], 128
    $region13: #{tpu_custom_call.1} parent=1 // pred_fallthru
      _
    %v24 = vld [vmem:[%s1] sm:$0x3]
    %v25 = vld [vmem:[#allocation2] sm:$0x1f]
    %27 = vset.pattern.permute.xlu0 0
    %28 = vperm.xlu0 %27, %v24
    %v29 = vpop.permute.xlu0 %28
    %v31 = vsub.f32 %v24, %v29
    %v32 = vlaneseq
    %v33 = vshrl.u32 %v32, 7
    %v34 = vsub.s32 0, %v33
    %v35 = vrot.slane %v25, %v34
    %v36 = vadd.f32 %v31, %v35
    %v37 = vmax.f32 %v36, 0.0
    %vm38 = vcmask 58368
    %v39 = vsel %vm38, %v37, 0.0
    %40 = vadd.xlane.f32.xlu0 %v39
    %v41 = vpop.xlane.xlu0 %40
    %v42 = vadd.f32 %v41, 0.0
    %43 = vset.pattern.permute.xlu0 1
    %44 = vperm.xlu0 %43, %v24
    %v45 = vpop.permute.xlu0 %44
    %v47 = vsub.f32 %v24, %v45
    %v48 = vlaneseq
    %v49 = vshrl.u32 %v48, 7
    %v50 = vsub.s32 1, %v49
    %v51 = vrot.slane %v25, %v50
    %v52 = vadd.f32 %v47, %v51
    %v53 = vmax.f32 %v52, 0.0
    %v54 = vsel %vm38, %v53, 0.0
    %55 = vadd.xlane.f32.xlu0 %v54
    %v56 = vpop.xlane.xlu0 %55
    %v57 = vadd.f32 %v42, %v56
    %58 = vset.pattern.permute.xlu0 2
    %59 = vperm.xlu0 %58, %v24
    %v60 = vpop.permute.xlu0 %59
    %v62 = vsub.f32 %v24, %v60
    %v63 = vlaneseq
    %v64 = vshrl.u32 %v63, 7
    %v65 = vsub.s32 2, %v64
    %v66 = vrot.slane %v25, %v65
    %v67 = vadd.f32 %v62, %v66
    %v68 = vmax.f32 %v67, 0.0
    %v69 = vsel %vm38, %v68, 0.0
    %70 = vadd.xlane.f32.xlu0 %v69
    %v71 = vpop.xlane.xlu0 %70
    %v72 = vadd.f32 %v57, %v71
    %73 = vset.pattern.permute.xlu0 3
    %74 = vperm.xlu0 %73, %v24
    %v75 = vpop.permute.xlu0 %74
    %v77 = vsub.f32 %v24, %v75
    %v78 = vlaneseq
    %v79 = vshrl.u32 %v78, 7
    %v80 = vsub.s32 3, %v79
    %v81 = vrot.slane %v25, %v80
    %v82 = vadd.f32 %v77, %v81
    %v83 = vmax.f32 %v82, 0.0
    %v84 = vsel %vm38, %v83, 0.0
    %85 = vadd.xlane.f32.xlu0 %v84
    %v86 = vpop.xlane.xlu0 %85
    %v87 = vadd.f32 %v72, %v86
    %88 = vset.pattern.permute.xlu0 4
    %89 = vperm.xlu0 %88, %v24
    %v90 = vpop.permute.xlu0 %89
    %v92 = vsub.f32 %v24, %v90
    %v93 = vlaneseq
    %v94 = vshrl.u32 %v93, 7
    %v95 = vsub.s32 4, %v94
    %v96 = vrot.slane %v25, %v95
    %v97 = vadd.f32 %v92, %v96
    %v98 = vmax.f32 %v97, 0.0
    %v99 = vsel %vm38, %v98, 0.0
    %100 = vadd.xlane.f32.xlu0 %v99
    %v101 = vpop.xlane.xlu0 %100
    %v102 = vadd.f32 %v87, %v101
    %vm103 = vcmask 1024
    %v104 = vsel %vm103, %v102, 0.0
    %105 = vadd.xlane.f32.xlu0 %v104
    %v106 = vpop.xlane.xlu0 %105
    %v107 = vrot.slane %v106, 4
    %v108 = vadd.f32 %v106, %v107
    %v109 = vrot.slane %v108, 2
    %v110 = vadd.f32 %v108, %v109
    %v111 = vrot.slane %v110, 1
    %v112 = vadd.f32 %v110, %v111
    %s113 = vtos %v112
    %v114 = vstv %s113
    %vm115 = vcmask 0
    %116 = vst.msk [vmem:[#allocation5] sm:$0x1] %vm115, %v114
    // Predicated region
    $region14: #{tpu_custom_call.1} parent=1 // pred_check
      _
    $region15: #{tpu_custom_call.1} parent=1 // pred_check_branch
      %118 = sbr.rel (0) target = $region17
    $region16: #{tpu_custom_call.1} parent=1 // pred_region
      %s120 = ssub.s32 16, 16
      %121 = vsyncadd [#allocation4], %s120
      %s123 = sshll.u32 [#allocation5], 4
      %s124 = int_to_ptr.vmem [resolvable:$true] %s123
      %126 = dma.vmem_to_hbm [thread:$0]  %s124, 16, %s2, [#allocation4]
    $region17: #{tpu_custom_call.1} parent=1 // pred_fallthru
      _
    // Predicated region
    $region18: #{tpu_custom_call.1} parent=1 // pred_check
      _
    $region19: #{tpu_custom_call.1} parent=1 // pred_check_branch
      %128 = sbr.rel (0) target = $region21
    $region20: #{tpu_custom_call.1} parent=1 // pred_region
      %129 = dma.done [#allocation4], 16
    $region21: #{tpu_custom_call.1} parent=1 // pred_fallthru
      _
    %130 = vsyncpa [#allocation3], 1
    %131 = vsyncpa [#allocation4], 1

</llo_original>
